<compile_context>
chip_gen: v6e
topology: v6e:2x2x1
jax: 0.10.0
libtpu: 0.0.40
codegen_flags: <defaults>
</compile_context>

<pallas_src>
import functools

import jax
import jax.numpy as jnp
from jax import lax
from jax.experimental import pallas as pl
from jax.experimental.pallas import tpu as pltpu


_IN_DIM = 256


def _round_up(a, b):
    return (a + b - 1) // b * b


def _cdiv(a, b):
    return (a + b - 1) // b


def _vmem_capacity_bytes():
    """Physical VMEM for this generation; conservative fallback if unknown."""
    try:
        return int(pltpu.get_tpu_info().vmem_capacity_bytes)
    except Exception:
        return 64 * 1024 * 1024


def _oae_kernel(p_ref, x_ref, we_ref, wd_ref, h_ref, d_ref):
    """One batch tile: encoder matmul, ordered mask, decoder matmul.

    p_ref  : SMEM (1,) int32            -- random cutoff p (scalar prefetch)
    x_ref  : VMEM (tm, 256) f32         -- input batch tile (cast to bf16 here)
    we_ref : VMEM (256, size_pad) bf16  -- encoder weight, (K, N) layout
    wd_ref : VMEM (size_pad, 256) bf16  -- decoder weight, (K, N) layout
    h_ref  : VMEM (tm, size_pad) f32    -- masked hidden output tile
    d_ref  : VMEM (tm, 256) f32         -- decoded output tile
    """
    # bf16 cast on the VPU (free filler under the MXU); f32 accumulation.
    x = x_ref[...].astype(jnp.bfloat16)

    # Encoder: (tm, 256) @ (256, size_pad) -> (tm, size_pad).  Plain (K,N)
    # contraction: no per-step weight re-orientation.
    hidden = jnp.dot(x, we_ref[...], preferred_element_type=jnp.float32)

    # Ordered mask: keep columns [0, p], zero columns [p+1, size_pad).
    p = p_ref[0]
    col = lax.broadcasted_iota(jnp.int32, hidden.shape, 1)
    hidden = jnp.where(col <= p, hidden, 0.0)

    h_ref[...] = hidden

    # Decoder: (tm, size_pad) @ (size_pad, 256) -> (tm, 256).
    decoded = jnp.dot(hidden.astype(jnp.bfloat16), wd_ref[...],
                      preferred_element_type=jnp.float32)
    d_ref[...] = decoded


def prepare_kernel_weights(w_enc, w_dec):
    """One-time weight prep (outside the step loop).

    * Cast to bf16.
    * Transpose into MXU-native (K, N) layout so the in-kernel dots are plain
      contractions (the transpose cost is paid once, not per step).
    * Pad the hidden dim up to a multiple of 128 (256 when size >= 256, since
      the v6e/v7x MXU tile is 256 wide) so stores are lane-dense.

    Inputs keep the PyTorch (out, in) layout:
      w_enc : (size, 256), w_dec : (256, size)
    Returns:
      we_kn : (256, size_pad) bf16,  wd_kn : (size_pad, 256) bf16
    """
    size = w_enc.shape[0]
    pad_unit = 256 if size >= 256 else 128
    size_pad = _round_up(max(size, pad_unit), pad_unit)

    we_kn = jnp.asarray(w_enc, dtype=jnp.bfloat16).T       # (256, size)
    wd_kn = jnp.asarray(w_dec, dtype=jnp.bfloat16).T       # (size, 256)
    if size_pad != size:
        we_kn = jnp.pad(we_kn, ((0, 0), (0, size_pad - size)))
        wd_kn = jnp.pad(wd_kn, ((0, size_pad - size), (0, 0)))
    return we_kn, wd_kn


@functools.partial(jax.jit, static_argnames=("size",))
def ordered_autoencoder_forward(x, w_enc_k, w_dec_k, p, *, size):
    """Pallas forward pass.

    x        : (B, 256) float32
    w_enc_k  : (256, size_pad) bf16  -- from prepare_kernel_weights
    w_dec_k  : (size_pad, 256) bf16  -- from prepare_kernel_weights
    p        : (1,) int32 device array -- random cutoff, uniform in [0, size-2]
    size     : python int (static)   -- true hidden width
    Returns (hidden_masked (B, size) f32, decoded (B, 256) f32).
    """
    B, in_dim = x.shape
    size_pad = w_enc_k.shape[1]
    assert in_dim == _IN_DIM and w_dec_k.shape == (size_pad, _IN_DIM)

    # ---- batch tile policy ------------------------------------------------
    # Big tiles amortize the ~0.35us/step overhead; at least 2 grid steps when
    # B permits so both v7x TensorCores get work.  16-row aligned for bf16
    # sublane packing.
    tm = min(512, _round_up(max(B, 1), 16))
    if B >= 32:
        tm = min(tm, _round_up(_cdiv(B, 2), 16))

    # ---- VMEM budget ------------------------------------------------------
    vmem_cap = _vmem_capacity_bytes()
    budget = max(vmem_cap - 8 * 1024 * 1024, 16 * 1024 * 1024)

    def vmem_estimate(tm_):
        return (
            2 * tm_ * in_dim * 4                 # x tiles (f32, double-buffered)
            + 2 * size_pad * in_dim * 2          # both weights (bf16, single-buffered)
            + 2 * tm_ * size_pad * 4             # hidden out tiles (f32)
            + 2 * tm_ * in_dim * 4               # decoded out tiles (f32)
            + (2 << 20)                          # Mosaic internal scratch headroom
        )

    while vmem_estimate(tm) > budget and tm > 16:
        tm = max(16, _round_up(tm // 2, 16))

    B_pad = _round_up(B, tm)
    xp = x if B_pad == B else jnp.pad(x, ((0, B_pad - B), (0, 0)))
    grid = (B_pad // tm,)

    vmem_limit = int(min(max(vmem_estimate(tm), 32 * 1024 * 1024), budget))

    cost = pl.CostEstimate(
        flops=4 * B_pad * in_dim * size_pad,     # encoder + decoder matmuls
        transcendentals=0,
        bytes_accessed=(B_pad * in_dim * 4              # x (f32)
                        + 2 * size_pad * in_dim * 2     # weights (bf16)
                        + B_pad * size_pad * 4          # hidden (f32)
                        + B_pad * in_dim * 4),          # decoded (f32)
    )

    hidden, decoded = pl.pallas_call(
        _oae_kernel,
        out_shape=(
            jax.ShapeDtypeStruct((B_pad, size_pad), jnp.float32),
            jax.ShapeDtypeStruct((B_pad, _IN_DIM), jnp.float32),
        ),
        grid_spec=pltpu.PrefetchScalarGridSpec(
            num_scalar_prefetch=1,
            grid=grid,
            in_specs=[
                # x tile: auto-pipelined (double-buffered) over the batch.
                pl.BlockSpec((tm, in_dim), lambda i, _p: (i, 0)),
                # Weights: constant block -> VMEM-resident, single-buffered.
                pl.BlockSpec((in_dim, size_pad), lambda i, _p: (0, 0),
                             pipeline_mode=pl.Buffered(1)),
                pl.BlockSpec((size_pad, in_dim), lambda i, _p: (0, 0),
                             pipeline_mode=pl.Buffered(1)),
            ],
            out_specs=(
                pl.BlockSpec((tm, size_pad), lambda i, _p: (i, 0)),   # hidden
                pl.BlockSpec((tm, in_dim), lambda i, _p: (i, 0)),     # decoded
            ),
        ),
        compiler_params=pltpu.CompilerParams(
            dimension_semantics=("parallel",),
            vmem_limit_bytes=vmem_limit,
        ),
        cost_estimate=cost,
    )(p, xp, w_enc_k, w_dec_k)

    return hidden[:B, :size], decoded[:B]


def _xavier_normal(key, shape):
    # torch.nn.init.xavier_normal_ for a Linear weight (out, in):
    # std = sqrt(2 / (fan_in + fan_out))
    fan_out, fan_in = shape
    std = (2.0 / (fan_in + fan_out)) ** 0.5
    return std * jax.random.normal(key, shape, dtype=jnp.float32)


if __name__ == "__main__":
    hidden_layer_size = 32
    batch = 32

    key = jax.random.PRNGKey(0)
    k_x, k_enc, k_dec, k_p = jax.random.split(key, 4)

    x = jax.random.normal(k_x, (batch, _IN_DIM), dtype=jnp.float32)
    w_enc = _xavier_normal(k_enc, (hidden_layer_size, _IN_DIM))   # (size, 256)
    w_dec = _xavier_normal(k_dec, (_IN_DIM, hidden_layer_size))   # (256, size)

    # One-time weight prep (bf16 + transpose to (K,N) + pad), outside the
    # forward/step path.
    w_enc_k, w_dec_k = prepare_kernel_weights(w_enc, w_dec)

    # p = np.random.randint(size - 1) -> uniform in [0, size - 2]; kept on
    # device (no int()/host sync, no recompile per p).
    p = jax.random.randint(k_p, (1,), 0, hidden_layer_size - 1, dtype=jnp.int32)

    hidden, decoded = ordered_autoencoder_forward(
        x, w_enc_k, w_dec_k, p, size=hidden_layer_size)
    jax.block_until_ready((hidden, decoded))

    # Reference check: same bf16-cast operands, true f32 matmul.
    xb = x.astype(jnp.bfloat16).astype(jnp.float32)
    web = w_enc.astype(jnp.bfloat16).astype(jnp.float32)
    wdb = w_dec.astype(jnp.bfloat16).astype(jnp.float32)
    h_ref = jnp.dot(xb, web.T, precision=lax.Precision.HIGHEST)
    mask = (jnp.arange(hidden_layer_size) <= p[0]).astype(jnp.float32)
    h_ref = h_ref * mask[None, :]
    d_ref = jnp.dot(h_ref.astype(jnp.bfloat16).astype(jnp.float32), wdb.T,
                    precision=lax.Precision.HIGHEST)

    assert hidden.shape == (batch, hidden_layer_size)
    assert decoded.shape == (batch, _IN_DIM)
    assert jnp.allclose(hidden, h_ref, atol=1e-2, rtol=1e-2)
    assert jnp.allclose(decoded, d_ref, atol=1e-2, rtol=1e-2)

    print("KERNEL_OK")
</pallas_src>

<mosaic_0001>
module attributes {stable_mosaic.version = 11 : i64} {
  func.func @_oae_kernel(%arg0: i32, %arg1: memref<1xi32, #tpu.memory_space<smem>>, %arg2: memref<16x256xf32, #tpu.memory_space<vmem>>, %arg3: memref<256x128xbf16, #tpu.memory_space<vmem>>, %arg4: memref<128x256xbf16, #tpu.memory_space<vmem>>, %arg5: memref<16x128xf32, #tpu.memory_space<vmem>>, %arg6: memref<16x256xf32, #tpu.memory_space<vmem>>) attributes {dimension_semantics = [#tpu.dimension_semantics<parallel>], iteration_bounds = array<i64: 2>, scalar_prefetch = 1 : i64, scratch_operands = 0 : i64, tpu.core_type = #tpu.core_type<tc>, window_params = [{transform_indices = @transform_0, window_bounds = array<i64: 16, 256>}, {pipeline_mode = #tpu.pipeline_mode<synchronous>, transform_indices = @transform_1, window_bounds = array<i64: 256, 128>}, {pipeline_mode = #tpu.pipeline_mode<synchronous>, transform_indices = @transform_2, window_bounds = array<i64: 128, 256>}, {transform_indices = @transform_3, window_bounds = array<i64: 16, 128>}, {transform_indices = @transform_4, window_bounds = array<i64: 16, 256>}]} {
    %c0 = arith.constant 0 : index
    %c0_0 = arith.constant 0 : index
    %0 = vector.load %arg2[%c0, %c0_0] : memref<16x256xf32, #tpu.memory_space<vmem>>, vector<16x256xf32>
    %1 = arith.truncf %0 : vector<16x256xf32> to vector<16x256xbf16>
    %c0_1 = arith.constant 0 : index
    %c0_2 = arith.constant 0 : index
    %2 = vector.load %arg3[%c0_1, %c0_2] : memref<256x128xbf16, #tpu.memory_space<vmem>>, vector<256x128xbf16>
    %cst = arith.constant dense<0.000000e+00> : vector<16x128xf32>
    %3 = tpu.matmul %1, %2, %cst {dimension_numbers = #tpu.dot_dimension_numbers<[1], [0], [0], [1], [0, 0, 1, 1], [], []>} : vector<16x256xbf16>, vector<256x128xbf16>, vector<16x128xf32> -> vector<16x128xf32>
    %c0_3 = arith.constant 0 : index
    %4 = memref.load %arg1[%c0_3] : memref<1xi32, #tpu.memory_space<smem>>
    %5 = tpu.iota {dimensions = array<i32: 1>} : vector<16x128xi32>
    %6 = vector.broadcast %4 : i32 to vector<16x128xi32>
    %7 = arith.cmpi sle, %5, %6 : vector<16x128xi32>
    %cst_4 = arith.constant 0.000000e+00 : f32
    %8 = vector.broadcast %cst_4 : f32 to vector<16x128xf32>
    %9 = arith.select %7, %3, %8 : vector<16x128xi1>, vector<16x128xf32>
    %c0_5 = arith.constant 0 : index
    %c0_6 = arith.constant 0 : index
    %10 = vector.load %arg5[%c0_5, %c0_6] : memref<16x128xf32, #tpu.memory_space<vmem>>, vector<16x128xf32>
    tpu.vector_store %arg5[%c0_5, %c0_6], %9 {strides = array<i32>} : memref<16x128xf32, #tpu.memory_space<vmem>>, vector<16x128xf32>,
    %11 = arith.truncf %9 : vector<16x128xf32> to vector<16x128xbf16>
    %c0_7 = arith.constant 0 : index
    %c0_8 = arith.constant 0 : index
    %12 = vector.load %arg4[%c0_7, %c0_8] : memref<128x256xbf16, #tpu.memory_space<vmem>>, vector<128x256xbf16>
    %cst_9 = arith.constant dense<0.000000e+00> : vector<16x256xf32>
    %13 = tpu.matmul %11, %12, %cst_9 {dimension_numbers = #tpu.dot_dimension_numbers<[1], [0], [0], [1], [0, 0, 1, 1], [], []>} : vector<16x128xbf16>, vector<128x256xbf16>, vector<16x256xf32> -> vector<16x256xf32>
    %c0_10 = arith.constant 0 : index
    %c0_11 = arith.constant 0 : index
    %14 = vector.load %arg6[%c0_10, %c0_11] : memref<16x256xf32, #tpu.memory_space<vmem>>, vector<16x256xf32>
    tpu.vector_store %arg6[%c0_10, %c0_11], %13 {strides = array<i32>} : memref<16x256xf32, #tpu.memory_space<vmem>>, vector<16x256xf32>,
    return
  }
  func.func @transform_0(%arg0: i32, %arg1: memref<1xi32, #tpu.memory_space<smem>>) -> (i32, i32) {
    %c0_i32 = arith.constant 0 : i32
    %c0_i32_0 = arith.constant 0 : i32
    return %arg0, %c0_i32 : i32, i32
  }
  func.func @transform_1(%arg0: i32, %arg1: memref<1xi32, #tpu.memory_space<smem>>) -> (i32, i32) {
    %c0_i32 = arith.constant 0 : i32
    %c0_i32_0 = arith.constant 0 : i32
    %c0_i32_1 = arith.constant 0 : i32
    return %c0_i32, %c0_i32_0 : i32, i32
  }
  func.func @transform_2(%arg0: i32, %arg1: memref<1xi32, #tpu.memory_space<smem>>) -> (i32, i32) {
    %c0_i32 = arith.constant 0 : i32
    %c0_i32_0 = arith.constant 0 : i32
    %c0_i32_1 = arith.constant 0 : i32
    return %c0_i32, %c0_i32_0 : i32, i32
  }
  func.func @transform_3(%arg0: i32, %arg1: memref<1xi32, #tpu.memory_space<smem>>) -> (i32, i32) {
    %c0_i32 = arith.constant 0 : i32
    %c0_i32_0 = arith.constant 0 : i32
    return %arg0, %c0_i32 : i32, i32
  }
  func.func @transform_4(%arg0: i32, %arg1: memref<1xi32, #tpu.memory_space<smem>>) -> (i32, i32) {
    %c0_i32 = arith.constant 0 : i32
    %c0_i32_0 = arith.constant 0 : i32
    return %arg0, %c0_i32 : i32, i32
  }
}

</mosaic_0001>

<llo_original>
// kernel: ordered_autoencoder_forward.1
$region0: #{ordered_autoencoder_forward.1}
  #allocation0 [shape = 'u32[]', space=smem, size = 0x4, offset = 0x4, fixed_abs, tag = 'smem constant byte address 0x4 - core index']
  #allocation1 [shape = 'u32[144,128]{1,0:T(1,128)}', space=vmem, size = 0x12000, scoped, tag = 'internal scratch']
  #allocation2 [shape = 's32[1]{0}', space=sflag, size = 0x4, scoped, tag = 'scoped memory for ordered_autoencoder_forward.1']
  #allocation3 [shape = 's32[1]{0:T(128)S(6)}', space=smem, size = 0x200, scoped, tag = 'prefetched SMEM operand 0']
  %s0 = inlined_call_operand.<no memory space> [shape: s32[1], index: 0, kind: input, shape index: {}]
  %s1 = inlined_call_operand.hbm [shape: f32[32,256], index: 1, kind: input, shape index: {}]
  %s2 = inlined_call_operand.hbm [shape: bf16[256,128], index: 2, kind: input, shape index: {}]
  %s3 = inlined_call_operand.hbm [shape: bf16[128,256], index: 3, kind: input, shape index: {}]
  %s4 = inlined_call_operand.hbm [shape: f32[32,128], index: 4, kind: output, shape index: {0}]
  %s5 = inlined_call_operand.hbm [shape: f32[32,256], index: 5, kind: output, shape index: {1}]
  %6 = xla_tuple %s4, %s5
  %s7 = sld [smem:[#allocation0]]
  $region65: #{ordered_autoencoder_forward.1} parent=0
    _
  %s9 = ssub.s32 1, %s7
  %s10 = scalar_select 0, %s9, %s7
  %11 = sst [smem:[#allocation3]] %s0
  $region1: #{ordered_autoencoder_forward.1} parent=0
    #allocation4 [shape = 'u8[32768]{0}', space=vmem, size = 0x8000, scoped, tag = 'input window, operand 1']
    #allocation5 [shape = 's32[2]{0}', space=sflag, size = 0x8, scoped, tag = 'scoped memory for ordered_autoencoder_forward.1']
    #allocation6 [shape = 's32[2]{0}', space=sflag, size = 0x8, scoped, tag = 'scoped memory for ordered_autoencoder_forward.1']
    #allocation7 [shape = 'u8[65536]{0}', space=vmem, size = 0x10000, scoped, tag = 'input window, operand 2, single buffered']
    #allocation8 [shape = 's32[1]{0}', space=sflag, size = 0x4, scoped, tag = 'scoped memory for ordered_autoencoder_forward.1']
    #allocation9 [shape = 'u8[65536]{0}', space=vmem, size = 0x10000, scoped, tag = 'input window, operand 3, single buffered']
    #allocation10 [shape = 'u8[16384]{0}', space=vmem, size = 0x4000, scoped, tag = 'output window, operand 0']
    #allocation11 [shape = 'u8[32768]{0}', space=vmem, size = 0x8000, scoped, tag = 'output window, operand 1']
    #allocation12 [shape = 's32[2]{0}', space=sflag, size = 0x8, scoped, tag = 'scoped memory for ordered_autoencoder_forward.1']
    %12 = vsyncpa [#allocation5], 0
    %s13 = scalar_lea.sflag [#allocation5], 1
    %14 = vsyncpa %s13, 0
    %15 = vsyncpa [#allocation8], 0
    %16 = vsyncpa [#allocation6], 0
    %s17 = scalar_lea.sflag [#allocation6], 1
    %18 = vsyncpa %s17, 0
    %19 = vsyncpa [#allocation12], 0
    %s20 = scalar_lea.sflag [#allocation12], 1
    %21 = vsyncpa %s20, 0
    loop: start=0, step=1, limit=4
    $region2: #{ordered_autoencoder_forward.1} parent=1 // loop_pre_header
      _
    $region3: #{ordered_autoencoder_forward.1} parent=1 // loop_header
      %s23 = sphi 0, %s27
      %p24 = scmp.ge.s32.totalorder %s23, 4
      %s33 = sphi 0, %s35
      %s36 = sphi 0, %s33
      %s37 = sphi 0, %s36
      %s53 = sphi 0, %s37
      %s57 = sphi 0, %s57
      %s59 = sphi 0, %s57
      %s60 = sphi 0, %s59
      %s74 = sphi 0, %s60
      %s78 = sphi 0, %s78
      %s80 = sphi 0, %s78
      %s81 = sphi 0, %s80
      %s95 = sphi 0, %s81
      %s101 = sphi 0, %s103
      %s104 = sphi 0, %s101
      %s105 = sphi 0, %s104
      %s121 = sphi 0, %s105
      %s127 = sphi 0, %s129
      %s130 = sphi 0, %s127
      %s131 = sphi 0, %s130
      %s147 = sphi 0, %s131
    $region4: #{ordered_autoencoder_forward.1} parent=1 // loop_header_branch
      %26 = sbr.rel (%p24) target = $region8
    $region5: #{ordered_autoencoder_forward.1} parent=1 // loop_body
      %s28 = ssub.s32 %s23, 1
      %s29 = ssub.s32 %s23, 2
      %s30 = sadd.s32 %s23, 1
      %s31 = ssub.s32 %s23, %s30
      %p32 = scmp.eq.s32.totalorder %s31, 0
      %s34 = sadd.s32 %s33, 1
      %s35 = scalar_select %p32, %s33, %s34
      %p38 = pneg %p32
      %p39 = scmp.eq.s32.totalorder %s23, 1
      %p40 = por %p38, %p39
      %p41 = scmp.ne.s32.totalorder %s33, %s36
      %p42 = scmp.eq.s32.totalorder %s23, 0
      %p43 = por %p41, %p42
      %p44 = scmp.ne.s32.totalorder %s33, %s36
      %p45 = scmp.eq.s32.totalorder %s28, 1
      %p46 = por %p44, %p45
      %p47 = scmp.ne.s32.totalorder %s36, %s37
      %p48 = scmp.eq.s32.totalorder %s28, 0
      %p49 = por %p47, %p48
      %p50 = scmp.ne.s32.totalorder %s36, %s37
      %p51 = scmp.eq.s32.totalorder %s29, 1
      %p52 = por %p50, %p51
      %p54 = scmp.ne.s32.totalorder %s37, %s53
      %p55 = scmp.eq.s32.totalorder %s29, 0
      %p56 = por %p54, %p55
      %s58 = sadd.s32 %s57, 1
      %p61 = scmp.eq.s32.totalorder %s23, 1
      %p62 = scmp.ne.s32.totalorder %s57, %s59
      %p63 = scmp.eq.s32.totalorder %s23, 0
      %p64 = por %p62, %p63
      %p65 = scmp.ne.s32.totalorder %s57, %s59
      %p66 = scmp.eq.s32.totalorder %s28, 1
      %p67 = por %p65, %p66
      %p68 = scmp.ne.s32.totalorder %s59, %s60
      %p69 = scmp.eq.s32.totalorder %s28, 0
      %p70 = por %p68, %p69
      %p71 = scmp.ne.s32.totalorder %s59, %s60
      %p72 = scmp.eq.s32.totalorder %s29, 1
      %p73 = por %p71, %p72
      %p75 = scmp.ne.s32.totalorder %s60, %s74
      %p76 = scmp.eq.s32.totalorder %s29, 0
      %p77 = por %p75, %p76
      %s79 = sadd.s32 %s78, 1
      %p82 = scmp.eq.s32.totalorder %s23, 1
      %p83 = scmp.ne.s32.totalorder %s78, %s80
      %p84 = scmp.eq.s32.totalorder %s23, 0
      %p85 = por %p83, %p84
      %p86 = scmp.ne.s32.totalorder %s78, %s80
      %p87 = scmp.eq.s32.totalorder %s28, 1
      %p88 = por %p86, %p87
      %p89 = scmp.ne.s32.totalorder %s80, %s81
      %p90 = scmp.eq.s32.totalorder %s28, 0
      %p91 = por %p89, %p90
      %p92 = scmp.ne.s32.totalorder %s80, %s81
      %p93 = scmp.eq.s32.totalorder %s29, 1
      %p94 = por %p92, %p93
      %p96 = scmp.ne.s32.totalorder %s81, %s95
      %p97 = scmp.eq.s32.totalorder %s29, 0
      %p98 = por %p96, %p97
      %s99 = ssub.s32 %s23, %s30
      %p100 = scmp.eq.s32.totalorder %s99, 0
      %s102 = sadd.s32 %s101, 1
      %s103 = scalar_select %p100, %s101, %s102
      %p106 = pneg %p100
      %p107 = scmp.eq.s32.totalorder %s23, 1
      %p108 = por %p106, %p107
      %p109 = scmp.ne.s32.totalorder %s101, %s104
      %p110 = scmp.eq.s32.totalorder %s23, 0
      %p111 = por %p109, %p110
      %p112 = scmp.ne.s32.totalorder %s101, %s104
      %p113 = scmp.eq.s32.totalorder %s28, 1
      %p114 = por %p112, %p113
      %p115 = scmp.ne.s32.totalorder %s104, %s105
      %p116 = scmp.eq.s32.totalorder %s28, 0
      %p117 = por %p115, %p116
      %p118 = scmp.ne.s32.totalorder %s104, %s105
      %p119 = scmp.eq.s32.totalorder %s29, 1
      %p120 = por %p118, %p119
      %p122 = scmp.ne.s32.totalorder %s105, %s121
      %p123 = scmp.eq.s32.totalorder %s29, 0
      %p124 = por %p122, %p123
      %s125 = ssub.s32 %s23, %s30
      %p126 = scmp.eq.s32.totalorder %s125, 0
      %s128 = sadd.s32 %s127, 1
      %s129 = scalar_select %p126, %s127, %s128
      %p132 = pneg %p126
      %p133 = scmp.eq.s32.totalorder %s23, 1
      %p134 = por %p132, %p133
      %p135 = scmp.ne.s32.totalorder %s127, %s130
      %p136 = scmp.eq.s32.totalorder %s23, 0
      %p137 = por %p135, %p136
      %p138 = scmp.ne.s32.totalorder %s127, %s130
      %p139 = scmp.eq.s32.totalorder %s28, 1
      %p140 = por %p138, %p139
      %p141 = scmp.ne.s32.totalorder %s130, %s131
      %p142 = scmp.eq.s32.totalorder %s28, 0
      %p143 = por %p141, %p142
      %p144 = scmp.ne.s32.totalorder %s130, %s131
      %p145 = scmp.eq.s32.totalorder %s29, 1
      %p146 = por %p144, %p145
      %p148 = scmp.ne.s32.totalorder %s131, %s147
      %p149 = scmp.eq.s32.totalorder %s29, 0
      %p150 = por %p148, %p149
      %p151 = scmp.le.s32.totalorder 1, %s23
      %p152 = scmp.lt.s32.totalorder %s23, 3
      %p153 = pnand %p151, %p152
      %p154 = pneg %p153
      // Predicated region
      $region9: #{ordered_autoencoder_forward.1} parent=5 // pred_check
        _
      $region10: #{ordered_autoencoder_forward.1} parent=5 // pred_check_branch
        %156 = sbr.rel (%p153) target = $region12
      $region11: #{ordered_autoencoder_forward.1} parent=5 // pred_region
        %s157 = ssub.s32 %s23, 1
        // Predicated region
        $region13: #{ordered_autoencoder_forward.1} parent=11 // pred_check
          %p158 = pneg %p70
        $region14: #{ordered_autoencoder_forward.1} parent=11 // pred_check_branch
          %160 = sbr.rel (%p158) target = $region16
        $region15: #{ordered_autoencoder_forward.1} parent=11 // pred_region
          %s162 = ssub.s32 2048, 2048
          %163 = vsyncadd [#allocation8], %s162
          %s164 = sshll.u32 [#allocation7], 4
          %s165 = int_to_ptr.vmem [resolvable:$true] %s164
          %170 = dma.hbm_to_vmem [thread:$0]  %s2, 2048, %s165, [#allocation8], 64, 64, 4
        $region16: #{ordered_autoencoder_forward.1} parent=11 // pred_fallthru
          _
        // Predicated region
        $region17: #{ordered_autoencoder_forward.1} parent=11 // pred_check
          %p171 = pneg %p91
        $region18: #{ordered_autoencoder_forward.1} parent=11 // pred_check_branch
          %173 = sbr.rel (%p171) target = $region20
        $region19: #{ordered_autoencoder_forward.1} parent=11 // pred_region
          %s175 = ssub.s32 2048, 2048
          %176 = vsyncadd [#allocation8], %s175
          %s177 = sshll.u32 [#allocation9], 4
          %s178 = int_to_ptr.vmem [resolvable:$true] %s177
          %183 = dma.hbm_to_vmem [thread:$0]  %s3, 2048, %s178, [#allocation8], 128, 128, 8
        $region20: #{ordered_autoencoder_forward.1} parent=11 // pred_fallthru
          _
      $region12: #{ordered_autoencoder_forward.1} parent=5 // pred_fallthru
        _
      %p184 = scmp.lt.s32.totalorder %s23, 2
      // Predicated region
      $region21: #{ordered_autoencoder_forward.1} parent=5 // pred_check
        %p185 = pneg %p184
      $region22: #{ordered_autoencoder_forward.1} parent=5 // pred_check_branch
        %187 = sbr.rel (%p185) target = $region24
      $region23: #{ordered_autoencoder_forward.1} parent=5 // pred_region
        // Predicated region
        $region25: #{ordered_autoencoder_forward.1} parent=23 // pred_check
          %p188 = pneg %p43
        $region26: #{ordered_autoencoder_forward.1} parent=23 // pred_check_branch
          %190 = sbr.rel (%p188) target = $region28
        $region27: #{ordered_autoencoder_forward.1} parent=23 // pred_region
          %s191 = sand.u32 %s33, 1
          %s192 = scalar_lea.sflag [#allocation5], %s191
          %s193 = sand.u32 %s33, 1
          %s194 = smul.addr %s193, 32
          %s195 = scalar_lea.vmem [#allocation4], %s194
          %s196 = smul.u32 2, %s23
          %s198 = ssub.s32 512, 512
          %199 = vsyncadd %s192, %s198
          %s200 = smul.addr %s196, 2
          %s201 = smul.addr %s200, 128
          %s202 = scalar_lea.hbm %s1, %s201
          %s203 = sshll.u32 %s195, 4
          %s204 = int_to_ptr.vmem [resolvable:$true] %s203
          %209 = dma.hbm_to_vmem [thread:$0]  %s202, 512, %s204, %s192, 256, 256, 16
        $region28: #{ordered_autoencoder_forward.1} parent=23 // pred_fallthru
          _
      $region24: #{ordered_autoencoder_forward.1} parent=5 // pred_fallthru
        _
      %p210 = scmp.le.s32.totalorder 1, %s23
      %p211 = scmp.lt.s32.totalorder %s23, 3
      %p212 = pnand %p210, %p211
      %p213 = pneg %p212
      // Predicated region
      $region29: #{ordered_autoencoder_forward.1} parent=5 // pred_check
        _
      $region30: #{ordered_autoencoder_forward.1} parent=5 // pred_check_branch
        %215 = sbr.rel (%p212) target = $region32
      $region31: #{ordered_autoencoder_forward.1} parent=5 // pred_region
        %s216 = ssub.s32 %s23, 1
        %s217 = sand.u32 %s36, 1
        %s218 = scalar_lea.sflag [#allocation5], %s217
        %s219 = sand.u32 %s36, 1
        %s220 = smul.addr %s219, 32
        %s221 = scalar_lea.vmem [#allocation4], %s220
        // Predicated region
        $region33: #{ordered_autoencoder_forward.1} parent=31 // pred_check
          %p222 = pneg %p49
        $region34: #{ordered_autoencoder_forward.1} parent=31 // pred_check_branch
          %224 = sbr.rel (%p222) target = $region36
        $region35: #{ordered_autoencoder_forward.1} parent=31 // pred_region
          %225 = dma.done %s218, 512
        $region36: #{ordered_autoencoder_forward.1} parent=31 // pred_fallthru
          _
        // Predicated region
        $region37: #{ordered_autoencoder_forward.1} parent=31 // pred_check
          %p226 = pneg %p70
        $region38: #{ordered_autoencoder_forward.1} parent=31 // pred_check_branch
          %228 = sbr.rel (%p226) target = $region40
        $region39: #{ordered_autoencoder_forward.1} parent=31 // pred_region
          %229 = dma.done [#allocation8], 2048
        $region40: #{ordered_autoencoder_forward.1} parent=31 // pred_fallthru
          _
        // Predicated region
        $region41: #{ordered_autoencoder_forward.1} parent=31 // pred_check
          %p230 = pneg %p91
        $region42: #{ordered_autoencoder_forward.1} parent=31 // pred_check_branch
          %232 = sbr.rel (%p230) target = $region44
        $region43: #{ordered_autoencoder_forward.1} parent=31 // pred_region
          %233 = dma.done [#allocation8], 2048
        $region44: #{ordered_autoencoder_forward.1} parent=31 // pred_fallthru
          _
        %s234 = sand.u32 %s36, 1
        %s235 = scalar_lea.sflag [#allocation5], %s234
        %s236 = sand.u32 %s36, 1
        %s237 = smul.addr %s236, 32
        %s238 = scalar_lea.vmem [#allocation4], %s237
        %p239 = pneg %p49
        %p240 = pneg %p46
        %p241 = pneg %p70
        %p242 = pneg %p67
        %p243 = pneg %p91
        %p244 = pneg %p88
        %p245 = pneg %p117
        %p246 = pneg %p114
        %s247 = sand.u32 %s104, 1
        %s248 = scalar_lea.sflag [#allocation6], %s247
        %s249 = sand.u32 %s104, 1
        %s250 = smul.addr %s249, 16
        %s251 = scalar_lea.vmem [#allocation10], %s250
        %p252 = pneg %p143
        %p253 = pneg %p140
        %s254 = sand.u32 %s130, 1
        %s255 = scalar_lea.sflag [#allocation12], %s254
        %s256 = sand.u32 %s130, 1
        %s257 = smul.addr %s256, 32
        %s258 = scalar_lea.vmem [#allocation11], %s257
        %s259 = smul.u32 2, %s28
        %s260 = smul.u32 2, %s28
        %s261 = smul.u32 2, %s28
        %v263 = vld [vmem:[%s221] sm:$0xff]
        %v264 = vld [vmem:[%s221 + $0x8] sm:$0xff]
        %v265 = vld [vmem:[%s221 + $0x10] sm:$0xff]
        %v266 = vld [vmem:[%s221 + $0x18] sm:$0xff]
        %v267 = vpack.c.bf16 %v265, %v263
        %v268 = vpack.c.bf16 %v266, %v264
        %v269 = vld [vmem:[#allocation7] sm:$0xf]
        %v270 = vld [vmem:[#allocation7 + $0x4] sm:$0xf]
        %v271 = vld [vmem:[#allocation7 + $0x8] sm:$0xf]
        %v272 = vld [vmem:[#allocation7 + $0xc] sm:$0xf]
        %v273 = vld [vmem:[#allocation7 + $0x10] sm:$0xf]
        %v274 = vld [vmem:[#allocation7 + $0x14] sm:$0xf]
        %v275 = vld [vmem:[#allocation7 + $0x18] sm:$0xf]
        %v276 = vld [vmem:[#allocation7 + $0x1c] sm:$0xf]
        %v277 = vld [vmem:[#allocation7 + $0x20] sm:$0xf]
        %v278 = vld [vmem:[#allocation7 + $0x24] sm:$0xf]
        %v279 = vld [vmem:[#allocation7 + $0x28] sm:$0xf]
        %v280 = vld [vmem:[#allocation7 + $0x2c] sm:$0xf]
        %v281 = vld [vmem:[#allocation7 + $0x30] sm:$0xf]
        %v282 = vld [vmem:[#allocation7 + $0x34] sm:$0xf]
        %v283 = vld [vmem:[#allocation7 + $0x38] sm:$0xf]
        %v284 = vld [vmem:[#allocation7 + $0x3c] sm:$0xf]
        %v285 = vld [vmem:[#allocation7 + $0x40] sm:$0xf]
        %v286 = vld [vmem:[#allocation7 + $0x44] sm:$0xf]
        %v287 = vld [vmem:[#allocation7 + $0x48] sm:$0xf]
        %v288 = vld [vmem:[#allocation7 + $0x4c] sm:$0xf]
        %v289 = vld [vmem:[#allocation7 + $0x50] sm:$0xf]
        %v290 = vld [vmem:[#allocation7 + $0x54] sm:$0xf]
        %v291 = vld [vmem:[#allocation7 + $0x58] sm:$0xf]
        %v292 = vld [vmem:[#allocation7 + $0x5c] sm:$0xf]
        %v293 = vld [vmem:[#allocation7 + $0x60] sm:$0xf]
        %v294 = vld [vmem:[#allocation7 + $0x64] sm:$0xf]
        %v295 = vld [vmem:[#allocation7 + $0x68] sm:$0xf]
        %v296 = vld [vmem:[#allocation7 + $0x6c] sm:$0xf]
        %v297 = vld [vmem:[#allocation7 + $0x70] sm:$0xf]
        %v298 = vld [vmem:[#allocation7 + $0x74] sm:$0xf]
        %v299 = vld [vmem:[#allocation7 + $0x78] sm:$0xf]
        %v300 = vld [vmem:[#allocation7 + $0x7c] sm:$0xf]
        %v333 = vunpack.c.l.b16 %v269
        %v334 = vunpack.c.l.b16 %v270
        %v335 = vunpack.c.l.b16 %v271
        %v336 = vunpack.c.l.b16 %v272
        %v337 = vunpack.c.l.b16 %v273
        %v338 = vunpack.c.l.b16 %v274
        %v339 = vunpack.c.l.b16 %v275
        %v340 = vunpack.c.l.b16 %v276
        %v341 = vunpack.c.l.b16 %v277
        %v342 = vunpack.c.l.b16 %v278
        %v343 = vunpack.c.l.b16 %v279
        %v344 = vunpack.c.l.b16 %v280
        %v345 = vunpack.c.l.b16 %v281
        %v346 = vunpack.c.l.b16 %v282
        %v347 = vunpack.c.l.b16 %v283
        %v348 = vunpack.c.l.b16 %v284
        %v349 = vunpack.c.l.b16 %v285
        %v350 = vunpack.c.l.b16 %v286
        %v351 = vunpack.c.l.b16 %v287
        %v352 = vunpack.c.l.b16 %v288
        %v353 = vunpack.c.l.b16 %v289
        %v354 = vunpack.c.l.b16 %v290
        %v355 = vunpack.c.l.b16 %v291
        %v356 = vunpack.c.l.b16 %v292
        %v357 = vunpack.c.l.b16 %v293
        %v358 = vunpack.c.l.b16 %v294
        %v359 = vunpack.c.l.b16 %v295
        %v360 = vunpack.c.l.b16 %v296
        %v361 = vunpack.c.l.b16 %v297
        %v362 = vunpack.c.l.b16 %v298
        %v363 = vunpack.c.l.b16 %v299
        %v364 = vunpack.c.l.b16 %v300
        %v365 = vpack.c.b16 %v334, %v333
        %v366 = vpack.c.b16 %v336, %v335
        %v367 = vpack.c.b16 %v338, %v337
        %v368 = vpack.c.b16 %v340, %v339
        %v369 = vpack.c.b16 %v342, %v341
        %v370 = vpack.c.b16 %v344, %v343
        %v371 = vpack.c.b16 %v346, %v345
        %v372 = vpack.c.b16 %v348, %v347
        %v373 = vpack.c.b16 %v350, %v349
        %v374 = vpack.c.b16 %v352, %v351
        %v375 = vpack.c.b16 %v354, %v353
        %v376 = vpack.c.b16 %v356, %v355
        %v377 = vpack.c.b16 %v358, %v357
        %v378 = vpack.c.b16 %v360, %v359
        %v379 = vpack.c.b16 %v362, %v361
        %v380 = vpack.c.b16 %v364, %v363
        %397 = vmatprep.subr.bf16.mxu0 0
        %398 = vmatpush1.bf16.msra.mxu0 %v372
        %399 = vmatprep.subr.bf16.mxu0 0
        %400 = vmatpush1.bf16.msra.mxu0 %v371
        %401 = vmatprep.subr.bf16.mxu0 0
        %402 = vmatpush1.bf16.msra.mxu0 %v370
        %403 = vmatprep.subr.bf16.mxu0 0
        %404 = vmatpush1.bf16.msra.mxu0 %v369
        %405 = vmatprep.subr.bf16.mxu0 0
        %406 = vmatpush1.bf16.msra.mxu0 %v368
        %407 = vmatprep.subr.bf16.mxu0 0
        %408 = vmatpush1.bf16.msra.mxu0 %v367
        %409 = vmatprep.subr.bf16.mxu0 0
        %410 = vmatpush1.bf16.msra.mxu0 %v366
        %411 = vmatprep.subr.bf16.mxu0 0
        %412 = vmatpush1.bf16.msra.mxu0 %v365
        %413 = vmatprep.subr.bf16.mxu0 0
        %414 = vmatpush2.bf16.msra.mxu0 %v380
        %415 = vmatprep.subr.bf16.mxu0 0
        %416 = vmatpush2.bf16.msra.mxu0 %v379
        %417 = vmatprep.subr.bf16.mxu0 0
        %418 = vmatpush2.bf16.msra.mxu0 %v378
        %419 = vmatprep.subr.bf16.mxu0 0
        %420 = vmatpush2.bf16.msra.mxu0 %v377
        %421 = vmatprep.subr.bf16.mxu0 0
        %422 = vmatpush2.bf16.msra.mxu0 %v376
        %423 = vmatprep.subr.bf16.mxu0 0
        %424 = vmatpush2.bf16.msra.mxu0 %v375
        %425 = vmatprep.subr.bf16.mxu0 0
        %426 = vmatpush2.bf16.msra.mxu0 %v374
        %427 = vmatprep.subr.bf16.mxu0 0
        %428 = vmatpush2.bf16.msra.mxu0 %v373
        %429 = vmatprep.mubr.bf16.mxu0 %v268
        %430 = vmatmul.mubr.bf16.gmra.mxu0 %v267
        %v431 = vpop.f32.mrf.mxu0
        %v432 = vadd.f32 0.0, %v431
        %v433 = vpop.f32.mrf.mxu0
        %v434 = vpop.f32.mrf.mxu0
        %v435 = vadd.f32 0.0, %v434
        %v436 = vpop.f32.mrf.mxu0
        %437 = vdwg.mxu0
        %s438 = sld [smem:[#allocation3]]
        %v439 = vlaneseq
        %v440 = vand.u32 %v439, 127
        %v441 = vstv %s438
        %vm442 = vcmp.le.s32.totalorder %v440, %v441
        %v443 = vsel %vm442, %v432, 0.0
        %v444 = vsel %vm442, %v435, 0.0
        %445 = vst [vmem:[%s251] sm:$0xff] %v443
        %446 = vst [vmem:[%s251 + $0x8] sm:$0xff] %v444
        %v447 = vpack.c.bf16 %v444, %v443
        %v448 = vld [vmem:[#allocation9] sm:$0xff]
        %v449 = vld [vmem:[#allocation9 + $0x8] sm:$0xff]
        %v450 = vld [vmem:[#allocation9 + $0x10] sm:$0xff]
        %v451 = vld [vmem:[#allocation9 + $0x18] sm:$0xff]
        %v452 = vld [vmem:[#allocation9 + $0x20] sm:$0xff]
        %v453 = vld [vmem:[#allocation9 + $0x28] sm:$0xff]
        %v454 = vld [vmem:[#allocation9 + $0x30] sm:$0xff]
        %v455 = vld [vmem:[#allocation9 + $0x38] sm:$0xff]
        %v456 = vld [vmem:[#allocation9 + $0x40] sm:$0xff]
        %v457 = vld [vmem:[#allocation9 + $0x48] sm:$0xff]
        %v458 = vld [vmem:[#allocation9 + $0x50] sm:$0xff]
        %v459 = vld [vmem:[#allocation9 + $0x58] sm:$0xff]
        %v460 = vld [vmem:[#allocation9 + $0x60] sm:$0xff]
        %v461 = vld [vmem:[#allocation9 + $0x68] sm:$0xff]
        %v462 = vld [vmem:[#allocation9 + $0x70] sm:$0xff]
        %v463 = vld [vmem:[#allocation9 + $0x78] sm:$0xff]
        %v480 = vunpack.c.l.b16 %v448
        %v481 = vunpack.c.h.b16 %v448
        %v482 = vunpack.c.l.b16 %v449
        %v483 = vunpack.c.h.b16 %v449
        %v484 = vunpack.c.l.b16 %v450
        %v485 = vunpack.c.h.b16 %v450
        %v486 = vunpack.c.l.b16 %v451
        %v487 = vunpack.c.h.b16 %v451
        %v488 = vunpack.c.l.b16 %v452
        %v489 = vunpack.c.h.b16 %v452
        %v490 = vunpack.c.l.b16 %v453
        %v491 = vunpack.c.h.b16 %v453
        %v492 = vunpack.c.l.b16 %v454
        %v493 = vunpack.c.h.b16 %v454
        %v494 = vunpack.c.l.b16 %v455
        %v495 = vunpack.c.h.b16 %v455
        %v496 = vunpack.c.l.b16 %v456
        %v497 = vunpack.c.h.b16 %v456
        %v498 = vunpack.c.l.b16 %v457
        %v499 = vunpack.c.h.b16 %v457
        %v500 = vunpack.c.l.b16 %v458
        %v501 = vunpack.c.h.b16 %v458
        %v502 = vunpack.c.l.b16 %v459
        %v503 = vunpack.c.h.b16 %v459
        %v504 = vunpack.c.l.b16 %v460
        %v505 = vunpack.c.h.b16 %v460
        %v506 = vunpack.c.l.b16 %v461
        %v507 = vunpack.c.h.b16 %v461
        %v508 = vunpack.c.l.b16 %v462
        %v509 = vunpack.c.h.b16 %v462
        %v510 = vunpack.c.l.b16 %v463
        %v511 = vunpack.c.h.b16 %v463
        %v512 = vpack.c.b16 %v482, %v480
        %v513 = vpack.c.b16 %v483, %v481
        %v514 = vpack.c.b16 %v486, %v484
        %v515 = vpack.c.b16 %v487, %v485
        %v516 = vpack.c.b16 %v490, %v488
        %v517 = vpack.c.b16 %v491, %v489
        %v518 = vpack.c.b16 %v494, %v492
        %v519 = vpack.c.b16 %v495, %v493
        %v520 = vpack.c.b16 %v498, %v496
        %v521 = vpack.c.b16 %v499, %v497
        %v522 = vpack.c.b16 %v502, %v500
        %v523 = vpack.c.b16 %v503, %v501
        %v524 = vpack.c.b16 %v506, %v504
        %v525 = vpack.c.b16 %v507, %v505
        %v526 = vpack.c.b16 %v510, %v508
        %v527 = vpack.c.b16 %v511, %v509
        %544 = vmatprep.subr.bf16.mxu0 %v527
        %545 = vmatpush1.bf16.msra.mxu0 %v526
        %546 = vmatprep.subr.bf16.mxu0 %v525
        %547 = vmatpush1.bf16.msra.mxu0 %v524
        %548 = vmatprep.subr.bf16.mxu0 %v523
        %549 = vmatpush1.bf16.msra.mxu0 %v522
        %550 = vmatprep.subr.bf16.mxu0 %v521
        %551 = vmatpush1.bf16.msra.mxu0 %v520
        %552 = vmatprep.subr.bf16.mxu0 %v519
        %553 = vmatpush1.bf16.msra.mxu0 %v518
        %554 = vmatprep.subr.bf16.mxu0 %v517
        %555 = vmatpush1.bf16.msra.mxu0 %v516
        %556 = vmatprep.subr.bf16.mxu0 %v515
        %557 = vmatpush1.bf16.msra.mxu0 %v514
        %558 = vmatprep.subr.bf16.mxu0 %v513
        %559 = vmatpush1.bf16.msra.mxu0 %v512
        %560 = vmatprep.subr.bf16.mxu0 0
        %561 = vmatpush2.bf16.msra.mxu0 0
        %562 = vmatprep.subr.bf16.mxu0 0
        %563 = vmatpush2.bf16.msra.mxu0 0
        %564 = vmatprep.subr.bf16.mxu0 0
        %565 = vmatpush2.bf16.msra.mxu0 0
        %566 = vmatprep.subr.bf16.mxu0 0
        %567 = vmatpush2.bf16.msra.mxu0 0
        %568 = vmatprep.subr.bf16.mxu0 0
        %569 = vmatpush2.bf16.msra.mxu0 0
        %570 = vmatprep.subr.bf16.mxu0 0
        %571 = vmatpush2.bf16.msra.mxu0 0
        %572 = vmatprep.subr.bf16.mxu0 0
        %573 = vmatpush2.bf16.msra.mxu0 0
        %574 = vmatprep.subr.bf16.mxu0 0
        %575 = vmatpush2.bf16.msra.mxu0 0
        %576 = vmatprep.mubr.bf16.mxu0 0
        %577 = vmatmul.mubr.bf16.gmra.mxu0 %v447
        %v578 = vpop.f32.mrf.mxu0
        %v579 = vadd.f32 0.0, %v578
        %v580 = vpop.f32.mrf.mxu0
        %v581 = vadd.f32 0.0, %v580
        %v582 = vpop.f32.mrf.mxu0
        %v583 = vadd.f32 0.0, %v582
        %v584 = vpop.f32.mrf.mxu0
        %v585 = vadd.f32 0.0, %v584
        %586 = vdwg.mxu0
        %587 = vst [vmem:[%s258] sm:$0xff] %v579
        %588 = vst [vmem:[%s258 + $0x8] sm:$0xff] %v581
        %589 = vst [vmem:[%s258 + $0x10] sm:$0xff] %v583
        %590 = vst [vmem:[%s258 + $0x18] sm:$0xff] %v585
        %s591 = sand.u32 %s104, 1
        %s592 = scalar_lea.sflag [#allocation6], %s591
        %s593 = sand.u32 %s104, 1
        %s594 = smul.addr %s593, 16
        %s595 = scalar_lea.vmem [#allocation10], %s594
        %s596 = sand.u32 %s130, 1
        %s597 = scalar_lea.sflag [#allocation12], %s596
        %s598 = sand.u32 %s130, 1
        %s599 = smul.addr %s598, 32
        %s600 = scalar_lea.vmem [#allocation11], %s599
        // Predicated region
        $region45: #{ordered_autoencoder_forward.1} parent=31 // pred_check
          %p601 = pneg %p114
        $region46: #{ordered_autoencoder_forward.1} parent=31 // pred_check_branch
          %603 = sbr.rel (%p601) target = $region48
        $region47: #{ordered_autoencoder_forward.1} parent=31 // pred_region
          %s604 = smul.u32 2, %s28
          %s606 = ssub.s32 256, 256
          %607 = vsyncadd %s592, %s606
          %s608 = smul.addr %s604, 128
          %s609 = scalar_lea.hbm %s4, %s608
          %s610 = sshll.u32 %s595, 4
          %s611 = int_to_ptr.vmem [resolvable:$true] %s610
          %616 = dma.vmem_to_hbm [thread:$0]  %s611, 256, %s609, %s592, 128, 128, 8
        $region48: #{ordered_autoencoder_forward.1} parent=31 // pred_fallthru
          _
        // Predicated region
        $region49: #{ordered_autoencoder_forward.1} parent=31 // pred_check
          %p617 = pneg %p140
        $region50: #{ordered_autoencoder_forward.1} parent=31 // pred_check_branch
          %619 = sbr.rel (%p617) target = $region52
        $region51: #{ordered_autoencoder_forward.1} parent=31 // pred_region
          %s620 = smul.u32 2, %s28
          %s622 = ssub.s32 512, 512
          %623 = vsyncadd %s597, %s622
          %s624 = smul.addr %s620, 2
          %s625 = smul.addr %s624, 128
          %s626 = scalar_lea.hbm %s5, %s625
          %s627 = sshll.u32 %s600, 4
          %s628 = int_to_ptr.vmem [resolvable:$true] %s627
          %633 = dma.vmem_to_hbm [thread:$0]  %s628, 512, %s626, %s597, 256, 256, 16
        $region52: #{ordered_autoencoder_forward.1} parent=31 // pred_fallthru
          _
      $region32: #{ordered_autoencoder_forward.1} parent=5 // pred_fallthru
        _
      %p634 = scmp.le.s32.totalorder 2, %s23
      // Predicated region
      $region53: #{ordered_autoencoder_forward.1} parent=5 // pred_check
        %p635 = pneg %p634
      $region54: #{ordered_autoencoder_forward.1} parent=5 // pred_check_branch
        %637 = sbr.rel (%p635) target = $region56
      $region55: #{ordered_autoencoder_forward.1} parent=5 // pred_region
        %s638 = ssub.s32 %s23, 2
        // Predicated region
        $region57: #{ordered_autoencoder_forward.1} parent=55 // pred_check
          %p639 = pneg %p120
        $region58: #{ordered_autoencoder_forward.1} parent=55 // pred_check_branch
          %641 = sbr.rel (%p639) target = $region60
        $region59: #{ordered_autoencoder_forward.1} parent=55 // pred_region
          %s642 = sand.u32 %s105, 1
          %s643 = scalar_lea.sflag [#allocation6], %s642
          %s644 = sand.u32 %s105, 1
          %s645 = smul.addr %s644, 16
          %s646 = scalar_lea.vmem [#allocation10], %s645
          %647 = dma.done %s643, 256
        $region60: #{ordered_autoencoder_forward.1} parent=55 // pred_fallthru
          _
        // Predicated region
        $region61: #{ordered_autoencoder_forward.1} parent=55 // pred_check
          %p648 = pneg %p146
        $region62: #{ordered_autoencoder_forward.1} parent=55 // pred_check_branch
          %650 = sbr.rel (%p648) target = $region64
        $region63: #{ordered_autoencoder_forward.1} parent=55 // pred_region
          %s651 = sand.u32 %s131, 1
          %s652 = scalar_lea.sflag [#allocation12], %s651
          %s653 = sand.u32 %s131, 1
          %s654 = smul.addr %s653, 32
          %s655 = scalar_lea.vmem [#allocation11], %s654
          %656 = dma.done %s652, 512
        $region64: #{ordered_autoencoder_forward.1} parent=55 // pred_fallthru
          _
      $region56: #{ordered_autoencoder_forward.1} parent=5 // pred_fallthru
        _
    $region6: #{ordered_autoencoder_forward.1} parent=1 // loop_footer
      %s27 = sadd.s32 1, %s23
    $region7: #{ordered_autoencoder_forward.1} parent=1 // loop_footer_branch
      %22 = sbr.rel target = $region3
    $region8: #{ordered_autoencoder_forward.1} parent=1 // loop_exit
      _
    %657 = vsyncpa [#allocation5], 1
    %s658 = scalar_lea.sflag [#allocation5], 1
    %659 = vsyncpa %s658, 1
    %660 = vsyncpa [#allocation8], 1
    %661 = vsyncpa [#allocation6], 1
    %s662 = scalar_lea.sflag [#allocation6], 1
    %663 = vsyncpa %s662, 1
    %664 = vsyncpa [#allocation12], 1
    %s665 = scalar_lea.sflag [#allocation12], 1
    %666 = vsyncpa %s665, 1

</llo_original>
